<compile_context>
chip_gen: v5e
topology: v5e:2x2
jax: 0.10.0
libtpu: 0.0.40
codegen_flags: <defaults>
</compile_context>

<pallas_src>
import functools

import jax
import jax.numpy as jnp
from jax.experimental import pallas as pl
from jax.experimental.pallas import tpu as pltpu

# ----------------------- small (but lane-dense) RoBERTa config -----------------------
VOCAB = 100
MAX_POS = 64
HIDDEN = 128            # multiple of 128 -> lane-dense outputs everywhere
N_LAYERS = 2
N_HEADS = 4
HEAD_DIM = HIDDEN // N_HEADS
INTERMEDIATE = 256      # multiple of 128
PAD_ID = 1              # roberta padding_idx
LN_EPS = 1e-5

_VMEM_LIMIT = 32 * 1024 * 1024   # safe on v5e/v6e (128 MiB) and v7x (64 MiB per core)


def _compiler_params(dimension_semantics):
    return pltpu.CompilerParams(
        dimension_semantics=dimension_semantics,
        vmem_limit_bytes=_VMEM_LIMIT,
    )


def _pick_tile(dim, target, step):
    """Largest tile <= target that divides dim (stepping by `step`); else full dim."""
    if dim <= target:
        return dim
    for t in range(target, step - 1, -step):
        if dim % t == 0:
            return t
    return dim


def _gelu(x):
    # exact (erf) gelu, as in RoBERTa; computed in f32
    return 0.5 * x * (1.0 + jax.lax.erf(x * (1.0 / jnp.sqrt(jnp.float32(2.0)))))


def _layernorm_f32(y, g, b):
    # two-pass variance (review correctness note); y is f32
    mean = jnp.mean(y, axis=-1, keepdims=True)
    d = y - mean
    var = jnp.mean(d * d, axis=-1, keepdims=True)
    return d * jax.lax.rsqrt(var + LN_EPS) * g + b


# ----------------------- plain LayerNorm (embedding LN) -----------------------
def _ln_kernel(x_ref, g_ref, b_ref, o_ref):
    x = x_ref[...].astype(jnp.float32)
    o_ref[...] = _layernorm_f32(x, g_ref[...], b_ref[...]).astype(o_ref.dtype)


def layernorm(x, gamma, beta, out_dtype=jnp.bfloat16):
    M, H = x.shape
    tm = _pick_tile(M, 512, 8)
    return pl.pallas_call(
        _ln_kernel,
        out_shape=jax.ShapeDtypeStruct((M, H), out_dtype),
        grid_spec=pltpu.PrefetchScalarGridSpec(
            num_scalar_prefetch=0,
            grid=(M // tm,),
            in_specs=[
                pl.BlockSpec((tm, H), lambda i: (i, 0)),
                pl.BlockSpec((1, H), lambda i: (0, 0)),
                pl.BlockSpec((1, H), lambda i: (0, 0)),
            ],
            out_specs=pl.BlockSpec((tm, H), lambda i: (i, 0)),
        ),
        compiler_params=_compiler_params(("parallel",)),
    )(x, gamma.reshape(1, -1), beta.reshape(1, -1))


# ----------------------- generic tiled linear (+ optional activation) — pooler -----------------------
def _linear_kernel(x_ref, w_ref, b_ref, o_ref, acc_ref, *, activation):
    """acc += x_tile @ w_tile (bf16 MXU, f32 acc); at last K step: o = act(acc + b)."""
    k = pl.program_id(2)

    @pl.when(k == 0)
    def _():
        acc_ref[...] = jnp.zeros_like(acc_ref)

    acc_ref[...] += jnp.dot(x_ref[...], w_ref[...],
                            preferred_element_type=jnp.float32)

    @pl.when(k == pl.num_programs(2) - 1)
    def _():
        y = acc_ref[...] + b_ref[...]
        if activation == "gelu":
            y = _gelu(y)
        elif activation == "tanh":
            y = jnp.tanh(y)
        o_ref[...] = y.astype(o_ref.dtype)


def linear(x, w, b, activation="none", out_dtype=jnp.float32):
    M, K = x.shape
    N = w.shape[1]
    tm = _pick_tile(M, 256, 16)     # bf16 rows -> 16-step sublane tiles
    tn = _pick_tile(N, 512, 128)
    tk = _pick_tile(K, 512, 128)
    grid = (M // tm, N // tn, K // tk)
    return pl.pallas_call(
        functools.partial(_linear_kernel, activation=activation),
        out_shape=jax.ShapeDtypeStruct((M, N), out_dtype),
        grid_spec=pltpu.PrefetchScalarGridSpec(
            num_scalar_prefetch=0,
            grid=grid,
            in_specs=[
                pl.BlockSpec((tm, tk), lambda i, j, k: (i, k)),
                pl.BlockSpec((tk, tn), lambda i, j, k: (k, j)),
                pl.BlockSpec((1, tn), lambda i, j, k: (0, j)),
            ],
            out_specs=pl.BlockSpec((tm, tn), lambda i, j, k: (i, j)),
            scratch_shapes=[pltpu.VMEM((tm, tn), jnp.float32)],
        ),
        compiler_params=_compiler_params(("parallel", "parallel", "arbitrary")),
    )(x, w, b.reshape(1, -1))


# ----------------------- fused attention block: QKV proj + attention + Wo + residual + LN -----------------------
def _attn_block_kernel(h_ref, wqkv_ref, bqkv_ref, wo_ref, bo_ref, g_ref, b_ref,
                       m_ref, o_ref, *maybe_prob, n_heads, head_dim, hidden,
                       output_attentions):
    """Per-batch fused attention block.
    h block: (1,S,H) bf16 (also the residual).  wqkv: (H,3H) bf16.  wo: (H,H) bf16.
    mask block: (1,1,S) additive f32 bias.  Output: (1,S,H) bf16 = LN(attn_out@Wo + bo + h).
    Optional prob block: (1,nH,S,S) f32."""
    prob_ref = maybe_prob[0] if output_attentions else None
    h = h_ref[0]                                              # (S, H) bf16

    # fused QKV projection on the MXU (bf16 x bf16 -> f32 accumulate)
    qkv = jnp.dot(h, wqkv_ref[...],
                  preferred_element_type=jnp.float32) + bqkv_ref[...]   # (S, 3H) f32

    mask = m_ref[0]                                           # (1, S) f32, bcast over queries
    scale = jnp.float32(1.0 / float(head_dim) ** 0.5)

    # Wo bias + residual folded into the accumulator; Wo applied per head so the
    # per-head contexts never get re-packed into a lane-dense (S,H) buffer.
    acc = bo_ref[...] + h.astype(jnp.float32)                 # (S, H) f32
    prob_parts = []
    for hd in range(n_heads):                                  # static unrolled loop
        lo = hd * head_dim
        q = qkv[:, lo:lo + head_dim].astype(jnp.bfloat16)
        k = qkv[:, hidden + lo:hidden + lo + head_dim].astype(jnp.bfloat16)
        v = qkv[:, 2 * hidden + lo:2 * hidden + lo + head_dim].astype(jnp.bfloat16)
        s = jnp.dot(q, k.T, preferred_element_type=jnp.float32) * scale + mask
        mmax = jnp.max(s, axis=-1, keepdims=True)
        e = jnp.exp(s - mmax)
        denom = jnp.sum(e, axis=-1, keepdims=True)
        p = e * pl.reciprocal(denom, approx=True)             # EUP slot, VALU stays free
        ctx_h = jnp.dot(p.astype(jnp.bfloat16), v,
                        preferred_element_type=jnp.float32)   # (S, dh) f32
        # ctx @ Wo == sum_h ctx_h @ Wo[h*dh:(h+1)*dh, :]  (fused output projection)
        acc = acc + jnp.dot(ctx_h.astype(jnp.bfloat16),
                            wo_ref[lo:lo + head_dim, :],
                            preferred_element_type=jnp.float32)
        if output_attentions:
            prob_parts.append(p)

    o_ref[0] = _layernorm_f32(acc, g_ref[...], b_ref[...]).astype(o_ref.dtype)
    if output_attentions:
        prob_ref[0] = jnp.stack(prob_parts, axis=0).astype(prob_ref.dtype)


def attention_block(h3, wqkv, bqkv, wo, bo, ln_g, ln_b, mask_bias,
                    output_attentions=True):
    """h3: (B,S,H) bf16.  mask_bias: (B,1,S) f32 additive bias."""
    B, S, H = h3.shape
    kernel = functools.partial(
        _attn_block_kernel, n_heads=N_HEADS, head_dim=HEAD_DIM, hidden=HIDDEN,
        output_attentions=output_attentions)

    in_specs = [
        pl.BlockSpec((1, S, H), lambda b: (b, 0, 0)),
        pl.BlockSpec((H, 3 * H), lambda b: (0, 0)),
        pl.BlockSpec((1, 3 * H), lambda b: (0, 0)),
        pl.BlockSpec((H, H), lambda b: (0, 0)),
        pl.BlockSpec((1, H), lambda b: (0, 0)),
        pl.BlockSpec((1, H), lambda b: (0, 0)),
        pl.BlockSpec((1, H), lambda b: (0, 0)),
        pl.BlockSpec((1, 1, S), lambda b: (b, 0, 0)),
    ]
    if output_attentions:
        out_shape = (
            jax.ShapeDtypeStruct((B, S, H), jnp.bfloat16),
            jax.ShapeDtypeStruct((B, N_HEADS, S, S), jnp.float32),
        )
        out_specs = (
            pl.BlockSpec((1, S, H), lambda b: (b, 0, 0)),
            pl.BlockSpec((1, N_HEADS, S, S), lambda b: (b, 0, 0, 0)),
        )
    else:
        out_shape = jax.ShapeDtypeStruct((B, S, H), jnp.bfloat16)
        out_specs = pl.BlockSpec((1, S, H), lambda b: (b, 0, 0))

    # TODO(synk): for large S on v7x (64 MiB VMEM), add a query-tile grid axis so the
    # (S,S) per-head score block stays bounded; at S=8 a single tile is optimal.
    return pl.pallas_call(
        kernel,
        out_shape=out_shape,
        grid_spec=pltpu.PrefetchScalarGridSpec(
            num_scalar_prefetch=0,
            grid=(B,),
            in_specs=in_specs,
            out_specs=out_specs,
        ),
        compiler_params=_compiler_params(("parallel",)),
    )(h3, wqkv, bqkv.reshape(1, -1), wo, bo.reshape(1, -1),
      ln_g.reshape(1, -1), ln_b.reshape(1, -1), mask_bias)


# ----------------------- fused FFN block: up-proj + GELU + down-proj + residual + LN -----------------------
def _ffn_block_kernel(x_ref, wi_ref, bi_ref, wf_ref, bf_ref, g_ref, b_ref, o_ref):
    x = x_ref[...]                                                     # (tm, H) bf16
    u = jnp.dot(x, wi_ref[...], preferred_element_type=jnp.float32) + bi_ref[...]
    u = _gelu(u)                                                       # (tm, I) f32
    y = (jnp.dot(u.astype(jnp.bfloat16), wf_ref[...],
                 preferred_element_type=jnp.float32)
         + bf_ref[...] + x.astype(jnp.float32))
    o_ref[...] = _layernorm_f32(y, g_ref[...], b_ref[...]).astype(o_ref.dtype)


def ffn_block(x, wi, bi, wf, bf, ln_g, ln_b):
    M, H = x.shape
    I = wi.shape[1]
    tm = _pick_tile(M, 256, 16)     # bf16 rows -> 16-step sublane tiles
    return pl.pallas_call(
        _ffn_block_kernel,
        out_shape=jax.ShapeDtypeStruct((M, H), jnp.bfloat16),
        grid_spec=pltpu.PrefetchScalarGridSpec(
            num_scalar_prefetch=0,
            grid=(M // tm,),
            in_specs=[
                pl.BlockSpec((tm, H), lambda i: (i, 0)),
                pl.BlockSpec((H, I), lambda i: (0, 0)),
                pl.BlockSpec((1, I), lambda i: (0, 0)),
                pl.BlockSpec((I, H), lambda i: (0, 0)),
                pl.BlockSpec((1, H), lambda i: (0, 0)),
                pl.BlockSpec((1, H), lambda i: (0, 0)),
                pl.BlockSpec((1, H), lambda i: (0, 0)),
            ],
            out_specs=pl.BlockSpec((tm, H), lambda i: (i, 0)),
        ),
        compiler_params=_compiler_params(("parallel",)),
    )(x, wi, bi.reshape(1, -1), wf, bf.reshape(1, -1),
      ln_g.reshape(1, -1), ln_b.reshape(1, -1))


# ----------------------- parameter init (deterministic, synthetic; frozen weights) -----------------------
def _init_params(key):
    def nrm(key, shape, dtype=jnp.float32):
        return (0.02 * jax.random.normal(key, shape, dtype=jnp.float32)).astype(dtype)

    keys = iter(jax.random.split(key, 8 + N_LAYERS * 16))
    p = {
        "word_emb": nrm(next(keys), (VOCAB, HIDDEN)),
        "pos_emb": nrm(next(keys), (MAX_POS, HIDDEN)),
        "tok_emb": nrm(next(keys), (1, HIDDEN)),
        "emb_ln_g": jnp.ones((HIDDEN,), jnp.float32),
        "emb_ln_b": jnp.zeros((HIDDEN,), jnp.float32),
        # frozen MXU weights pre-cast to bf16 once
        "pooler_w": nrm(next(keys), (HIDDEN, HIDDEN), jnp.bfloat16),
        "pooler_b": jnp.zeros((HIDDEN,), jnp.float32),
        "layers": [],
    }
    for _ in range(N_LAYERS):
        wq = nrm(next(keys), (HIDDEN, HIDDEN))
        wk = nrm(next(keys), (HIDDEN, HIDDEN))
        wv = nrm(next(keys), (HIDDEN, HIDDEN))
        lyr = {
            # fused QKV weight/bias (concatenated along N) -> single in-kernel matmul
            "wqkv": jnp.concatenate([wq, wk, wv], axis=1).astype(jnp.bfloat16),
            "bqkv": jnp.zeros((3 * HIDDEN,), jnp.float32),
            "wo": nrm(next(keys), (HIDDEN, HIDDEN), jnp.bfloat16),
            "bo": jnp.zeros((HIDDEN,), jnp.float32),
            "ln1_g": jnp.ones((HIDDEN,), jnp.float32),
            "ln1_b": jnp.zeros((HIDDEN,), jnp.float32),
            "wi": nrm(next(keys), (HIDDEN, INTERMEDIATE), jnp.bfloat16),
            "bi": jnp.zeros((INTERMEDIATE,), jnp.float32),
            "wf": nrm(next(keys), (INTERMEDIATE, HIDDEN), jnp.bfloat16),
            "bf": jnp.zeros((HIDDEN,), jnp.float32),
            "ln2_g": jnp.ones((HIDDEN,), jnp.float32),
            "ln2_b": jnp.zeros((HIDDEN,), jnp.float32),
        }
        p["layers"].append(lyr)
    return p


# ----------------------- forward pass (glue in JAX, compute in Pallas) -----------------------
def pretrained_model_forward(params, input_ids, attention_mask=None,
                             output_attentions=True, output_hidden_states=True):
    B, S = input_ids.shape
    if attention_mask is None:
        attention_mask = jnp.ones((B, S), jnp.float32)
    attention_mask = attention_mask.astype(jnp.float32)

    # RoBERTa position ids: cumsum over non-pad tokens, offset by padding_idx.
    not_pad = (input_ids != PAD_ID).astype(jnp.int32)
    position_ids = jnp.cumsum(not_pad, axis=1) * not_pad + PAD_ID

    # Embedding gathers stay in plain JAX (data-dependent gather); LN is a Pallas kernel
    # that also casts activations to bf16 for the MXU pipeline.
    emb = (params["word_emb"][input_ids]
           + params["pos_emb"][position_ids]
           + params["tok_emb"][jnp.zeros_like(input_ids)])
    h2d = layernorm(emb.reshape(B * S, HIDDEN), params["emb_ln_g"], params["emb_ln_b"])
    h3 = h2d.reshape(B, S, HIDDEN)                      # bf16, heads packed in lanes

    # Additive attention mask, passed once as (B, 1, S); per-head/query broadcast in-kernel.
    mask_bias = ((1.0 - attention_mask) * -1e9)[:, None, :]

    hidden_states = [h3]
    attentions = []

    for lyr in params["layers"]:
        # one fused kernel: QKV proj + per-head attention + Wo + residual + LN
        if output_attentions:
            h3, probs = attention_block(h3, lyr["wqkv"], lyr["bqkv"], lyr["wo"],
                                        lyr["bo"], lyr["ln1_g"], lyr["ln1_b"],
                                        mask_bias, output_attentions=True)
            attentions.append(probs)
        else:
            h3 = attention_block(h3, lyr["wqkv"], lyr["bqkv"], lyr["wo"],
                                 lyr["bo"], lyr["ln1_g"], lyr["ln1_b"],
                                 mask_bias, output_attentions=False)

        # one fused kernel: up-proj + GELU + down-proj + residual + LN
        h2d = ffn_block(h3.reshape(B * S, HIDDEN), lyr["wi"], lyr["bi"],
                        lyr["wf"], lyr["bf"], lyr["ln2_g"], lyr["ln2_b"])
        h3 = h2d.reshape(B, S, HIDDEN)

        if output_hidden_states:
            hidden_states.append(h3)

    last_hidden_state = h3.astype(jnp.float32)
    # pooler: tanh(dense(first token))
    pooler_output = linear(h3[:, 0, :], params["pooler_w"], params["pooler_b"],
                           activation="tanh", out_dtype=jnp.float32)

    # Matches HF output order with output_hidden_states=True, output_attentions=True.
    return {
        "last_hidden_state": last_hidden_state,
        "pooler_output": pooler_output,
        "hidden_states": tuple(h.astype(jnp.float32) for h in hidden_states)
        if output_hidden_states else None,
        "attentions": tuple(attentions) if output_attentions else None,
    }


# ----------------------- demo -----------------------
if __name__ == "__main__":
    key = jax.random.PRNGKey(0)
    pkey, dkey = jax.random.split(key)
    params = _init_params(pkey)

    B, S = 2, 8
    # token ids in [2, VOCAB), avoid pad id; deterministic
    input_ids = jax.random.randint(dkey, (B, S), 2, VOCAB, dtype=jnp.int32)
    attention_mask = jnp.ones((B, S), jnp.float32)

    outputs = pretrained_model_forward(params, input_ids, attention_mask)
    jax.block_until_ready(outputs)

    assert outputs["last_hidden_state"].shape == (B, S, HIDDEN)
    assert outputs["pooler_output"].shape == (B, HIDDEN)
    assert len(outputs["hidden_states"]) == N_LAYERS + 1
    assert len(outputs["attentions"]) == N_LAYERS
    assert outputs["attentions"][0].shape == (B, N_HEADS, S, S)
    assert bool(jnp.all(jnp.isfinite(outputs["last_hidden_state"])))

    print("KERNEL_OK")
</pallas_src>

<mosaic_0001>
module attributes {stable_mosaic.version = 11 : i64} {
  func.func @_ln_kernel(%arg0: i32, %arg1: memref<16x128xf32, #tpu.memory_space<vmem>>, %arg2: memref<1x128xf32, #tpu.memory_space<vmem>>, %arg3: memref<1x128xf32, #tpu.memory_space<vmem>>, %arg4: memref<16x128xbf16, #tpu.memory_space<vmem>>) attributes {dimension_semantics = [#tpu.dimension_semantics<parallel>], iteration_bounds = array<i64: 1>, scalar_prefetch = 0 : i64, scratch_operands = 0 : i64, tpu.core_type = #tpu.core_type<tc>, window_params = [{transform_indices = @transform_0, window_bounds = array<i64: 16, 128>}, {pipeline_mode = #tpu.pipeline_mode<synchronous>, transform_indices = @transform_1, window_bounds = array<i64: 1, 128>}, {pipeline_mode = #tpu.pipeline_mode<synchronous>, transform_indices = @transform_2, window_bounds = array<i64: 1, 128>}, {transform_indices = @transform_3, window_bounds = array<i64: 16, 128>}]} {
    %c0 = arith.constant 0 : index
    %c0_0 = arith.constant 0 : index
    %0 = vector.load %arg1[%c0, %c0_0] : memref<16x128xf32, #tpu.memory_space<vmem>>, vector<16x128xf32>
    %c0_1 = arith.constant 0 : index
    %c0_2 = arith.constant 0 : index
    %1 = vector.load %arg2[%c0_1, %c0_2] : memref<1x128xf32, #tpu.memory_space<vmem>>, vector<1x128xf32>
    %c0_3 = arith.constant 0 : index
    %c0_4 = arith.constant 0 : index
    %2 = vector.load %arg3[%c0_3, %c0_4] : memref<1x128xf32, #tpu.memory_space<vmem>>, vector<1x128xf32>
    %cst = arith.constant dense<0.000000e+00> : vector<16xf32>
    %3 = vector.multi_reduction <add>, %0, %cst [1] : vector<16x128xf32> to vector<16xf32>
    %4 = vector.shape_cast %3 : vector<16xf32> to vector<16x1xf32>
    %cst_5 = arith.constant 1.280000e+02 : f32
    %5 = vector.broadcast %cst_5 : f32 to vector<16x1xf32>
    %6 = arith.divf %4, %5 : vector<16x1xf32>
    %7 = vector.broadcast %6 : vector<16x1xf32> to vector<16x128xf32>
    %8 = arith.subf %0, %7 : vector<16x128xf32>
    %9 = arith.mulf %8, %8 : vector<16x128xf32>
    %cst_6 = arith.constant dense<0.000000e+00> : vector<16xf32>
    %10 = vector.multi_reduction <add>, %9, %cst_6 [1] : vector<16x128xf32> to vector<16xf32>
    %11 = vector.shape_cast %10 : vector<16xf32> to vector<16x1xf32>
    %cst_7 = arith.constant 1.280000e+02 : f32
    %12 = vector.broadcast %cst_7 : f32 to vector<16x1xf32>
    %13 = arith.divf %11, %12 : vector<16x1xf32>
    %cst_8 = arith.constant 9.99999974E-6 : f32
    %14 = vector.broadcast %cst_8 : f32 to vector<16x1xf32>
    %15 = arith.addf %13, %14 : vector<16x1xf32>
    %16 = math.rsqrt %15 : vector<16x1xf32>
    %17 = vector.broadcast %16 : vector<16x1xf32> to vector<16x128xf32>
    %18 = arith.mulf %8, %17 : vector<16x128xf32>
    %19 = vector.broadcast %1 : vector<1x128xf32> to vector<16x128xf32>
    %20 = arith.mulf %18, %19 : vector<16x128xf32>
    %21 = vector.broadcast %2 : vector<1x128xf32> to vector<16x128xf32>
    %22 = arith.addf %20, %21 : vector<16x128xf32>
    %23 = arith.truncf %22 : vector<16x128xf32> to vector<16x128xbf16>
    %c0_9 = arith.constant 0 : index
    %c0_10 = arith.constant 0 : index
    %24 = vector.load %arg4[%c0_9, %c0_10] : memref<16x128xbf16, #tpu.memory_space<vmem>>, vector<16x128xbf16>
    tpu.vector_store %arg4[%c0_9, %c0_10], %23 {strides = array<i32>} : memref<16x128xbf16, #tpu.memory_space<vmem>>, vector<16x128xbf16>,
    return
  }
  func.func @transform_0(%arg0: i32) -> (i32, i32) {
    %c0_i32 = arith.constant 0 : i32
    %c0_i32_0 = arith.constant 0 : i32
    return %arg0, %c0_i32 : i32, i32
  }
  func.func @transform_1(%arg0: i32) -> (i32, i32) {
    %c0_i32 = arith.constant 0 : i32
    %c0_i32_0 = arith.constant 0 : i32
    %c0_i32_1 = arith.constant 0 : i32
    return %c0_i32, %c0_i32_0 : i32, i32
  }
  func.func @transform_2(%arg0: i32) -> (i32, i32) {
    %c0_i32 = arith.constant 0 : i32
    %c0_i32_0 = arith.constant 0 : i32
    %c0_i32_1 = arith.constant 0 : i32
    return %c0_i32, %c0_i32_0 : i32, i32
  }
  func.func @transform_3(%arg0: i32) -> (i32, i32) {
    %c0_i32 = arith.constant 0 : i32
    %c0_i32_0 = arith.constant 0 : i32
    return %arg0, %c0_i32 : i32, i32
  }
}

</mosaic_0001>

<llo_original>
// kernel: tpu_custom_call.1
$region0: #{tpu_custom_call.1}
  #allocation0 [shape = 'u32[]', space=smem, size = 0x4, offset = 0x4, fixed_abs, tag = 'smem constant byte address 0x4 - core index']
  #allocation1 [shape = 'u32[72,128]{1,0:T(1,128)}', space=vmem, size = 0x9000, scoped, tag = 'internal scratch']
  %s0 = inlined_call_operand.hbm [shape: f32[16,128], index: 0, kind: input, shape index: {}]
  %s1 = inlined_call_operand.hbm [shape: f32[1,128], index: 1, kind: input, shape index: {}]
  %s2 = inlined_call_operand.vmem [shape: f32[1,128], index: 2, kind: input, shape index: {}]
  %s3 = inlined_call_operand.hbm [shape: bf16[16,128], index: 3, kind: output, shape index: {}]
  %s4 = sld [smem:[#allocation0]]
  $region30: #{tpu_custom_call.1} parent=0
    _
  %s6 = ssub.s32 1, %s4
  %s7 = scalar_select 0, %s6, %s4
  $region1: #{tpu_custom_call.1} parent=0
    #allocation2 [shape = 'u8[8192]{0}', space=vmem, size = 0x2000, scoped, tag = 'input window, operand 0, single buffered']
    #allocation3 [shape = 's32[1]{0}', space=sflag, size = 0x4, scoped, tag = 'scoped memory for tpu_custom_call.1']
    #allocation4 [shape = 's32[1]{0}', space=sflag, size = 0x4, scoped, tag = 'scoped memory for tpu_custom_call.1']
    #allocation5 [shape = 'u8[512]{0}', space=vmem, size = 0x400, scoped, tag = 'input window, operand 1, single buffered']
    #allocation6 [shape = 's32[1]{0}', space=sflag, size = 0x4, scoped, tag = 'scoped memory for tpu_custom_call.1']
    #allocation7 [shape = 'u8[4096]{0}', space=vmem, size = 0x1000, scoped, tag = 'output window, operand 0, single buffered']
    %8 = vsyncpa [#allocation3], 0
    %9 = vsyncpa [#allocation6], 0
    %10 = vsyncpa [#allocation4], 0
    // Predicated region
    $region2: #{tpu_custom_call.1} parent=1 // pred_check
      _
    $region3: #{tpu_custom_call.1} parent=1 // pred_check_branch
      %12 = sbr.rel (0) target = $region5
    $region4: #{tpu_custom_call.1} parent=1 // pred_region
      %14 = vsyncadd [#allocation3], 0
      %s15 = sshll.u32 %s0, 4
      %s16 = int_to_ptr.hbm [resolvable:$true] %s15
      %s17 = sshll.u32 [#allocation2], 4
      %s18 = int_to_ptr.vmem [resolvable:$true] %s17
      %23 = dma.hbm_to_vmem [thread:$0]  %s16, 256, %s18, [#allocation3], 128, 128, 8
    $region5: #{tpu_custom_call.1} parent=1 // pred_fallthru
      _
    // Predicated region
    $region6: #{tpu_custom_call.1} parent=1 // pred_check
      _
    $region7: #{tpu_custom_call.1} parent=1 // pred_check_branch
      %25 = sbr.rel (0) target = $region9
    $region8: #{tpu_custom_call.1} parent=1 // pred_region
      %27 = vsyncadd [#allocation6], 0
      %s29 = sshll.u32 %s1, 4
      %s30 = int_to_ptr.hbm [resolvable:$true] %s29
      %s31 = sshll.u32 [#allocation5], 4
      %s32 = int_to_ptr.vmem [resolvable:$true] %s31
      %34 = dma.hbm_to_vmem [thread:$0]  %s30, 16, %s32, [#allocation6]
    $region9: #{tpu_custom_call.1} parent=1 // pred_fallthru
      _
    // Predicated region
    $region10: #{tpu_custom_call.1} parent=1 // pred_check
      _
    $region11: #{tpu_custom_call.1} parent=1 // pred_check_branch
      %36 = sbr.rel (0) target = $region13
    $region12: #{tpu_custom_call.1} parent=1 // pred_region
      _
    $region13: #{tpu_custom_call.1} parent=1 // pred_fallthru
      _
    // Predicated region
    $region14: #{tpu_custom_call.1} parent=1 // pred_check
      _
    $region15: #{tpu_custom_call.1} parent=1 // pred_check_branch
      %38 = sbr.rel (0) target = $region17
    $region16: #{tpu_custom_call.1} parent=1 // pred_region
      %40 = dma.done [#allocation3], 256
    $region17: #{tpu_custom_call.1} parent=1 // pred_fallthru
      _
    // Predicated region
    $region18: #{tpu_custom_call.1} parent=1 // pred_check
      _
    $region19: #{tpu_custom_call.1} parent=1 // pred_check_branch
      %42 = sbr.rel (0) target = $region21
    $region20: #{tpu_custom_call.1} parent=1 // pred_region
      %44 = dma.done [#allocation6], 16
    $region21: #{tpu_custom_call.1} parent=1 // pred_fallthru
      _
    %v45 = vld [vmem:[#allocation2] sm:$0xff]
    %v46 = vld [vmem:[#allocation2 + $0x8] sm:$0xff]
    %v47 = vld [vmem:[#allocation5] sm:$0x1]
    %v48 = vld [vmem:[%s2] sm:$0x1]
    %49 = vadd.xlane.f32.xlu0 %v45
    %v50 = vpop.xlane.xlu0 %49
    %51 = vadd.xlane.f32.xlu0 %v46
    %v52 = vpop.xlane.xlu0 %51
    %v53 = vrcp.pop 128.0
    %v54 = vmul.f32 128.0, %v53
    %v55 = vsub.f32 1.0, %v54
    %v56 = vmul.f32 %v53, %v55
    %v57 = vadd.f32 %v53, %v56
    %vm58 = vweird.f32 %v53
    %v59 = vsel %vm58, %v53, %v57
    %v60 = vmul.f32 %v50, %v59
    %v61 = vmul.f32 %v52, %v59
    %v62 = vsub.f32 %v45, %v60
    %v63 = vsub.f32 %v46, %v61
    %v64 = vmul.f32 %v62, %v62
    %v65 = vmul.f32 %v63, %v63
    %66 = vadd.xlane.f32.xlu0 %v64
    %v67 = vpop.xlane.xlu0 %66
    %68 = vadd.xlane.f32.xlu0 %v65
    %v69 = vpop.xlane.xlu0 %68
    %v70 = vmul.f32 %v67, %v59
    %v71 = vmul.f32 %v69, %v59
    %v72 = vadd.f32 %v70, 1e-05
    %v73 = vadd.f32 %v71, 1e-05
    %v74 = vrsqrt.pop %v72
    %v75 = vmul.f32 %v74, %v72
    %v76 = vmul.f32 %v75, %v74
    %v77 = vmul.f32 0.5, %v76
    %v78 = vsub.f32 1.5, %v77
    %v79 = vmul.f32 %v74, %v78
    %vm80 = vweird.f32 %v72
    %vm81 = vweird.f32 %v74
    %vm82 = vmor %vm80, %vm81
    %v83 = vsel %vm82, %v74, %v79
    %v84 = vrsqrt.pop %v73
    %v85 = vmul.f32 %v84, %v73
    %v86 = vmul.f32 %v85, %v84
    %v87 = vmul.f32 0.5, %v86
    %v88 = vsub.f32 1.5, %v87
    %v89 = vmul.f32 %v84, %v88
    %vm90 = vweird.f32 %v73
    %vm91 = vweird.f32 %v84
    %vm92 = vmor %vm90, %vm91
    %v93 = vsel %vm92, %v84, %v89
    %v94 = vmul.f32 %v62, %v83
    %v95 = vmul.f32 %v63, %v93
    %v97 = vperm.slane %v47, 0
    %v99 = vmul.f32 %v94, %v97
    %v100 = vmul.f32 %v95, %v97
    %v102 = vperm.slane %v48, 0
    %v104 = vadd.f32 %v99, %v102
    %v105 = vadd.f32 %v100, %v102
    %v106 = vpack.c.bf16 %v104, %v104
    %v107 = vpack.c.bf16 %v105, %v105
    %108 = vst [vmem:[#allocation7] sm:$0xf] %v106
    %109 = vst [vmem:[#allocation7 + $0x4] sm:$0xf] %v107
    // Predicated region
    $region22: #{tpu_custom_call.1} parent=1 // pred_check
      _
    $region23: #{tpu_custom_call.1} parent=1 // pred_check_branch
      %111 = sbr.rel (0) target = $region25
    $region24: #{tpu_custom_call.1} parent=1 // pred_region
      %113 = vsyncadd [#allocation4], 0
      %s114 = sshll.u32 [#allocation7], 4
      %s115 = int_to_ptr.vmem [resolvable:$true] %s114
      %s116 = sshll.u32 %s3, 4
      %s117 = int_to_ptr.hbm [resolvable:$true] %s116
      %122 = dma.vmem_to_hbm [thread:$0]  %s115, 128, %s117, [#allocation4], 64, 64, 4
    $region25: #{tpu_custom_call.1} parent=1 // pred_fallthru
      _
    // Predicated region
    $region26: #{tpu_custom_call.1} parent=1 // pred_check
      _
    $region27: #{tpu_custom_call.1} parent=1 // pred_check_branch
      %124 = sbr.rel (0) target = $region29
    $region28: #{tpu_custom_call.1} parent=1 // pred_region
      %126 = dma.done [#allocation4], 128
    $region29: #{tpu_custom_call.1} parent=1 // pred_fallthru
      _
    %127 = vsyncpa [#allocation3], 1
    %128 = vsyncpa [#allocation6], 1
    %129 = vsyncpa [#allocation4], 1

</llo_original>
